<compile_context>
chip_gen: v6e
topology: v6e:2x2x1
jax: 0.10.0
libtpu: 0.0.40
codegen_flags: <defaults>
</compile_context>

<pallas_src>
import functools

import jax
import jax.numpy as jnp
from jax import lax
from jax.experimental import pallas as pl
from jax.experimental.pallas import tpu as pltpu

_LANE = 128            # vreg lane width
_MAX_BLOCK_ROWS = 1024  # 1024*128*4B = 512 KiB per block (1 MiB double-buffered)


def _round_up(x, m):
    return ((x + m - 1) // m) * m


def _neglog_sum_kernel(x_ref, o_ref, acc_ref, *, rows_valid, block_rows,
                       blocks_per_split, need_mask):
    """Per-core-split partial sum of clamp(-log(x), max=100)."""
    c = pl.program_id(0)  # core split  (parallel)
    i = pl.program_id(1)  # block index (arbitrary / reduction)

    @pl.when(i == 0)
    def _():
        acc_ref[...] = jnp.zeros_like(acc_ref)

    x = x_ref[...].astype(jnp.float32)
    # F.binary_cross_entropy clamps log at -100 => per-elem loss = min(-log(x), 100)
    per_elem = jnp.minimum(-jnp.log(x), jnp.float32(100.0))

    if need_mask:
        # Mask rows beyond the real data (padding / out-of-bounds block tail).
        base_row = (c * blocks_per_split + i) * block_rows
        row_ids = base_row + lax.broadcasted_iota(jnp.int32, per_elem.shape, 0)
        per_elem = jnp.where(row_ids < rows_valid, per_elem, jnp.float32(0.0))

    # Fold the block into a single (8, 128) vreg accumulator: VPU-only adds,
    # co-issues with the EUP log pushes and the DMA of the next block.
    acc_ref[...] += per_elem.reshape(-1, 8, _LANE).sum(axis=0)

    @pl.when(i == pl.num_programs(1) - 1)
    def _():
        # One cross-lane (XLU) reduce per core split, once per kernel.
        o_ref[0, 0] = jnp.sum(acc_ref[...])


def sgan_g_loss(judge_xf):
    """loss = BCE(judge_xf, ones) = -mean(log(judge_xf)), computed in Pallas."""
    n = judge_xf.size
    x = judge_xf.reshape(-1)

    # Only pad to a multiple of 128 lanes (pad value 1.0 -> -log(1) = 0).
    # For typical NCHW discriminator outputs (H*W multiple of 128) this is a no-op.
    lane_pad = (-n) % _LANE
    if lane_pad:
        # TODO(synk): for huge non-128-divisible inputs, handle the <128-elem tail
        # separately to avoid this full-copy concatenate.
        x = jnp.concatenate([x, jnp.ones((lane_pad,), dtype=x.dtype)])
    rows = x.shape[0] // _LANE
    x2 = x.reshape(rows, _LANE)

    # Sublane multiple depends on dtype packing (8 for f32, 16 for bf16, ...).
    packing = max(1, 4 // jnp.dtype(x.dtype).itemsize)
    sub_mult = 8 * packing
    block_rows = min(_MAX_BLOCK_ROWS, _round_up(rows, sub_mult))

    total_blocks = pl.cdiv(rows, block_rows)
    # Split the reduction across TensorCores (2x on v7x megacore; a size-1 or
    # serially-iterated leading axis elsewhere).
    num_splits = 2 if total_blocks >= 2 else 1
    blocks_per_split = pl.cdiv(total_blocks, num_splits)
    need_mask = (num_splits * blocks_per_split * block_rows) != rows

    kernel = functools.partial(
        _neglog_sum_kernel,
        rows_valid=rows,
        block_rows=block_rows,
        blocks_per_split=blocks_per_split,
        need_mask=need_mask,
    )

    partial_sums = pl.pallas_call(
        kernel,
        out_shape=jax.ShapeDtypeStruct((num_splits, 1), jnp.float32),
        grid_spec=pltpu.PrefetchScalarGridSpec(
            num_scalar_prefetch=0,
            grid=(num_splits, blocks_per_split),
            in_specs=[pl.BlockSpec(
                (block_rows, _LANE),
                lambda c, i: (c * blocks_per_split + i, 0))],
            out_specs=pl.BlockSpec((1, 1), lambda c, i: (c, 0),
                                   memory_space=pltpu.SMEM),
            scratch_shapes=[pltpu.VMEM((8, _LANE), jnp.float32)],
        ),
        compiler_params=pltpu.CompilerParams(
            dimension_semantics=("parallel", "arbitrary")),
    )(x2)

    # n is static: bake 1/n as a constant multiply; tiny final add across splits.
    loss = partial_sums.sum() * jnp.float32(1.0 / n)
    return loss.astype(judge_xf.dtype)


if __name__ == "__main__":
    key = jax.random.PRNGKey(0)

    # Module-sized test: (N, C, H, W) discriminator probabilities in (0, 1).
    N, C, H, W = 2, 4, 16, 16
    judge_xf = jax.random.uniform(key, (N, C, H, W), dtype=jnp.float32,
                                  minval=0.05, maxval=0.95)
    loss = jax.block_until_ready(sgan_g_loss(judge_xf))
    ref = -jnp.mean(jnp.log(judge_xf))
    assert jnp.allclose(loss, ref, rtol=1e-5, atol=1e-6), (loss, ref)

    # Extra sanity check exercising the lane-pad + in-kernel row-mask path.
    key2 = jax.random.PRNGKey(1)
    odd = jax.random.uniform(key2, (3, 3, 5, 7), dtype=jnp.float32,
                             minval=0.05, maxval=0.95)
    loss2 = jax.block_until_ready(sgan_g_loss(odd))
    ref2 = -jnp.mean(jnp.log(odd))
    assert jnp.allclose(loss2, ref2, rtol=1e-5, atol=1e-6), (loss2, ref2)

    print("KERNEL_OK")
</pallas_src>

<mosaic_0001>
module attributes {stable_mosaic.version = 11 : i64} {
  func.func @_neglog_sum_kernel(%arg0: i32, %arg1: i32, %arg2: memref<16x128xf32, #tpu.memory_space<vmem>>, %arg3: memref<1x1xf32, #tpu.memory_space<smem>>, %arg4: memref<8x128xf32, #tpu.memory_space<vmem>>) attributes {dimension_semantics = [#tpu.dimension_semantics<parallel>, #tpu.dimension_semantics<arbitrary>], iteration_bounds = array<i64: 1, 1>, scalar_prefetch = 0 : i64, scratch_operands = 1 : i64, tpu.core_type = #tpu.core_type<tc>, window_params = [{transform_indices = @transform_0, window_bounds = array<i64: 16, 128>}, {transform_indices = @transform_1, window_bounds = array<i64: 1, 1>}]} {
    %c0_i32 = arith.constant 0 : i32
    %0 = arith.cmpi eq, %arg1, %c0_i32 : i32
    %1 = arith.extui %0 : i1 to i32
    %c0_i32_0 = arith.constant 0 : i32
    %2 = arith.cmpi ne, %1, %c0_i32_0 : i32
    scf.if %2 {
      %cst_10 = arith.constant 0.000000e+00 : f32
      %17 = vector.broadcast %cst_10 : f32 to vector<8x128xf32>
      %c0_11 = arith.constant 0 : index
      %c0_12 = arith.constant 0 : index
      %18 = vector.load %arg4[%c0_11, %c0_12] : memref<8x128xf32, #tpu.memory_space<vmem>>, vector<8x128xf32>
      tpu.vector_store %arg4[%c0_11, %c0_12], %17 {strides = array<i32>} : memref<8x128xf32, #tpu.memory_space<vmem>>, vector<8x128xf32>,
    } else {
    }
    %c0 = arith.constant 0 : index
    %c0_1 = arith.constant 0 : index
    %3 = vector.load %arg2[%c0, %c0_1] : memref<16x128xf32, #tpu.memory_space<vmem>>, vector<16x128xf32>
    %4 = math.log %3 : vector<16x128xf32>
    %cst = arith.constant 0.000000e+00 : f32
    %5 = vector.broadcast %cst : f32 to vector<16x128xf32>
    %6 = arith.subf %5, %4 : vector<16x128xf32>
    %cst_2 = arith.constant 1.000000e+02 : f32
    %7 = vector.broadcast %cst_2 : f32 to vector<16x128xf32>
    %8 = arith.minimumf %6, %7 : vector<16x128xf32>
    %c0_3 = arith.constant 0 : index
    %c0_4 = arith.constant 0 : index
    %9 = vector.load %arg4[%c0_3, %c0_4] : memref<8x128xf32, #tpu.memory_space<vmem>>, vector<8x128xf32>
    %10 = vector.shape_cast %8 : vector<16x128xf32> to vector<2x8x128xf32>
    %cst_5 = arith.constant dense<0.000000e+00> : vector<8x128xf32>
    %11 = vector.multi_reduction <add>, %10, %cst_5 [0] : vector<2x8x128xf32> to vector<8x128xf32>
    %12 = arith.addf %9, %11 : vector<8x128xf32>
    %c0_6 = arith.constant 0 : index
    %c0_7 = arith.constant 0 : index
    %13 = vector.load %arg4[%c0_6, %c0_7] : memref<8x128xf32, #tpu.memory_space<vmem>>, vector<8x128xf32>
    tpu.vector_store %arg4[%c0_6, %c0_7], %12 {strides = array<i32>} : memref<8x128xf32, #tpu.memory_space<vmem>>, vector<8x128xf32>,
    %c0_i32_8 = arith.constant 0 : i32
    %14 = arith.cmpi eq, %arg1, %c0_i32_8 : i32
    %15 = arith.extui %14 : i1 to i32
    %c0_i32_9 = arith.constant 0 : i32
    %16 = arith.cmpi ne, %15, %c0_i32_9 : i32
    scf.if %16 {
      %c0_10 = arith.constant 0 : index
      %c0_11 = arith.constant 0 : index
      %17 = vector.load %arg4[%c0_10, %c0_11] : memref<8x128xf32, #tpu.memory_space<vmem>>, vector<8x128xf32>
      %18 = vector.shape_cast %17 : vector<8x128xf32> to vector<1x8x128xf32>
      %cst_12 = arith.constant dense<0.000000e+00> : vector<1xf32>
      %19 = vector.multi_reduction <add>, %18, %cst_12 [1, 2] : vector<1x8x128xf32> to vector<1xf32>
      %20 = vector.shape_cast %19 : vector<1xf32> to vector<1x1x1xf32>
      %21 = vector.extract %20[0, 0, 0] : f32 from vector<1x1x1xf32>
      %c0_13 = arith.constant 0 : index
      %c0_14 = arith.constant 0 : index
      %22 = memref.load %arg3[%c0_13, %c0_14] : memref<1x1xf32, #tpu.memory_space<smem>>
      memref.store %21, %arg3[%c0_13, %c0_14] : memref<1x1xf32, #tpu.memory_space<smem>>
    } else {
    }
    return
  }
  func.func @transform_0(%arg0: i32, %arg1: i32) -> (i32, i32) {
    %c1_i32 = arith.constant 1 : i32
    %0 = arith.muli %arg0, %c1_i32 : i32
    %1 = arith.addi %0, %arg1 : i32
    %c0_i32 = arith.constant 0 : i32
    %c0_i32_0 = arith.constant 0 : i32
    return %1, %c0_i32 : i32, i32
  }
  func.func @transform_1(%arg0: i32, %arg1: i32) -> (i32, i32) {
    %c0_i32 = arith.constant 0 : i32
    %c0_i32_0 = arith.constant 0 : i32
    return %arg0, %c0_i32 : i32, i32
  }
}

</mosaic_0001>

<llo_original>
// kernel: tpu_custom_call.1
$region0: #{tpu_custom_call.1}
  #allocation0 [shape = 'u32[]', space=smem, size = 0x4, offset = 0x4, fixed_abs, tag = 'smem constant byte address 0x4 - core index']
  #allocation1 [shape = 'u32[144,128]{1,0:T(1,128)}', space=vmem, size = 0x12000, scoped, tag = 'internal scratch']
  #allocation2 [shape = 'f32[8,128]{1,0:T(8,128)}', space=vmem, size = 0x1000, scoped, tag = 'scratch operand']
  %s0 = inlined_call_operand.hbm [shape: f32[16,128], index: 0, kind: input, shape index: {}]
  %s1 = inlined_call_operand.hbm [shape: f32[1,1], index: 1, kind: output, shape index: {}]
  %s2 = sld [smem:[#allocation0]]
  $region26: #{tpu_custom_call.1} parent=0
    _
  %s4 = ssub.s32 1, %s2
  %s5 = scalar_select 0, %s4, %s2
  $region1: #{tpu_custom_call.1} parent=0
    #allocation3 [shape = 'u8[8192]{0}', space=vmem, size = 0x2000, scoped, tag = 'input window, operand 0, single buffered']
    #allocation4 [shape = 's32[1]{0}', space=sflag, size = 0x4, scoped, tag = 'scoped memory for tpu_custom_call.1']
    #allocation5 [shape = 's32[1]{0}', space=sflag, size = 0x4, scoped, tag = 'scoped memory for tpu_custom_call.1']
    #allocation6 [shape = 'u8[512]{0}', space=smem, size = 0x200, scoped, tag = 'output window, operand 0, single buffered']
    %6 = vsyncpa [#allocation4], 0
    %7 = vsyncpa [#allocation5], 0
    // Predicated region
    $region2: #{tpu_custom_call.1} parent=1 // pred_check
      _
    $region3: #{tpu_custom_call.1} parent=1 // pred_check_branch
      %9 = sbr.rel (0) target = $region5
    $region4: #{tpu_custom_call.1} parent=1 // pred_region
      %s10 = sadd.s32 0, 0
      %s11 = smul.u32 2, %s10
      %s13 = ssub.s32 256, 256
      %14 = vsyncadd [#allocation4], %s13
      %s15 = smul.addr %s11, 128
      %s16 = scalar_lea.hbm %s0, %s15
      %s17 = sshll.u32 [#allocation3], 4
      %s18 = int_to_ptr.vmem [resolvable:$true] %s17
      %23 = dma.hbm_to_vmem [thread:$0]  %s16, 256, %s18, [#allocation4], 128, 128, 8
    $region5: #{tpu_custom_call.1} parent=1 // pred_fallthru
      _
    // Predicated region
    $region6: #{tpu_custom_call.1} parent=1 // pred_check
      _
    $region7: #{tpu_custom_call.1} parent=1 // pred_check_branch
      %25 = sbr.rel (0) target = $region9
    $region8: #{tpu_custom_call.1} parent=1 // pred_region
      %26 = dma.done [#allocation4], 256
    $region9: #{tpu_custom_call.1} parent=1 // pred_fallthru
      _
    %s27 = sadd.s32 0, 0
    %s28 = smul.u32 2, %s27
    %p29 = scmp.eq.s32.totalorder 0, 0
    // Predicated region
    $region10: #{tpu_custom_call.1} parent=1 // pred_check
      %p30 = pneg %p29
    $region11: #{tpu_custom_call.1} parent=1 // pred_check_branch
      %32 = sbr.rel (%p30) target = $region13
    $region12: #{tpu_custom_call.1} parent=1 // pred_region
      %33 = vst [vmem:[#allocation2] sm:$0xff] 0.0
    $region13: #{tpu_custom_call.1} parent=1 // pred_fallthru
      _
    %v34 = vld [vmem:[#allocation3] sm:$0xff]
    %v35 = vld [vmem:[#allocation3 + $0x8] sm:$0xff]
    %v36 = vlog2.pop %v34
    %v37 = vmul.f32 %v36, 0.6931472
    %v38 = vlog2.pop %v35
    %v39 = vmul.f32 %v38, 0.6931472
    %v40 = vsub.f32 0.0, %v37
    %v41 = vsub.f32 0.0, %v39
    %v42 = vmin.f32 %v40, 100.0
    %v43 = vmin.f32 %v41, 100.0
    %v44 = vld [vmem:[#allocation2] sm:$0xff]
    %v45 = vadd.f32 %v42, %v43
    %v46 = vadd.f32 %v44, %v45
    %47 = vst [vmem:[#allocation2] sm:$0xff] %v46
    // Predicated region
    $region14: #{tpu_custom_call.1} parent=1 // pred_check
      %p48 = pneg %p29
    $region15: #{tpu_custom_call.1} parent=1 // pred_check_branch
      %50 = sbr.rel (%p48) target = $region17
    $region16: #{tpu_custom_call.1} parent=1 // pred_region
      %v51 = vld [vmem:[#allocation2] sm:$0xff]
      %52 = vadd.xlane.f32.xlu0 %v51
      %v53 = vpop.xlane.xlu0 %52
      %v54 = vrot.slane %v53, 4
      %v55 = vadd.f32 %v53, %v54
      %v56 = vrot.slane %v55, 2
      %v57 = vadd.f32 %v55, %v56
      %v58 = vrot.slane %v57, 1
      %v59 = vadd.f32 %v57, %v58
      %s60 = vtos %v59
      %s61 = scalar_lea.smem [#allocation6], 0
      %62 = sst [smem:[%s61]] %s60
    $region17: #{tpu_custom_call.1} parent=1 // pred_fallthru
      _
    // Predicated region
    $region18: #{tpu_custom_call.1} parent=1 // pred_check
      _
    $region19: #{tpu_custom_call.1} parent=1 // pred_check_branch
      %64 = sbr.rel (0) target = $region21
    $region20: #{tpu_custom_call.1} parent=1 // pred_region
      %s66 = ssub.s32 16, 16
      %67 = vsyncadd [#allocation5], %s66
      %70 = dma.smem_to_hbm [#allocation6], 16, %s1, [#allocation5]
    $region21: #{tpu_custom_call.1} parent=1 // pred_fallthru
      _
    // Predicated region
    $region22: #{tpu_custom_call.1} parent=1 // pred_check
      _
    $region23: #{tpu_custom_call.1} parent=1 // pred_check_branch
      %72 = sbr.rel (0) target = $region25
    $region24: #{tpu_custom_call.1} parent=1 // pred_region
      %73 = dma.done [#allocation5], 16
    $region25: #{tpu_custom_call.1} parent=1 // pred_fallthru
      _
    %74 = sfence
    %75 = vsyncpa [#allocation4], 1
    %76 = vsyncpa [#allocation5], 1

</llo_original>
